<compile_context>
chip_gen: v7x
topology: tpu7x:2x2x1
jax: 0.10.0
libtpu: 0.0.40
codegen_flags: <defaults>
</compile_context>

<pallas_src>
import functools

import jax
import jax.numpy as jnp
from jax.experimental import pallas as pl
from jax.experimental.pallas import tpu as pltpu


def next_multiple(x: int, base: int = 128) -> int:
    return ((x + base - 1) // base) * base


# ---------------------------------------------------------------------------
# Kernels
# ---------------------------------------------------------------------------

def _mlp_kernel(x_ref, w_in_ref, w_hid_ref, w_out_ref, o_ref, h_ref, *,
                resident_hidden: bool):
    """Grid = (batch_tiles, num_layers + 1); layer axis innermost ("arbitrary").

    l == 0        : h = relu(cast_bf16(x) @ w_in)
    1 <= l <= L   : h = relu(h @ w_hid[l-1])
    l == L (last) : o = h @ w_out  (uses the freshly computed h directly)

    The activation `h` persists across the layer axis in a bf16 VMEM scratch.
    """
    l = pl.program_id(1)
    n_l = pl.num_programs(1)

    @pl.when(l == 0)
    def _():
        # In-kernel f32 -> bf16 cast (saves a separate XLA cast pass over x).
        h = jnp.dot(x_ref[...].astype(jnp.bfloat16), w_in_ref[...],
                    preferred_element_type=jnp.float32)
        h_ref[...] = jnp.maximum(h, 0.0).astype(h_ref.dtype)

    @pl.when(l > 0)
    def _():
        if resident_hidden:
            w = w_hid_ref[jnp.maximum(l - 1, 0)]      # (H, H) from resident stack
        else:
            w = w_hid_ref[0]                          # (H, H) streamed layer
        h = jnp.maximum(
            jnp.dot(h_ref[...], w, preferred_element_type=jnp.float32), 0.0
        ).astype(h_ref.dtype)

        @pl.when(l < n_l - 1)
        def _():
            h_ref[...] = h

        @pl.when(l == n_l - 1)
        def _():
            # Feed the fresh activation straight into the output matmul.
            o_ref[...] = jnp.dot(h, w_out_ref[...],
                                 preferred_element_type=jnp.float32
                                 ).astype(o_ref.dtype)


def _mlp_kernel_no_hidden(x_ref, w_in_ref, w_out_ref, o_ref):
    """num_layers == 0 path: in_proj -> ReLU -> out_proj, all in vregs."""
    h = jnp.maximum(
        jnp.dot(x_ref[...].astype(jnp.bfloat16), w_in_ref[...],
                preferred_element_type=jnp.float32), 0.0).astype(jnp.bfloat16)
    o_ref[...] = jnp.dot(h, w_out_ref[...],
                         preferred_element_type=jnp.float32).astype(o_ref.dtype)


# ---------------------------------------------------------------------------
# Param preparation (one-off, outside the per-call forward)
# ---------------------------------------------------------------------------

def prepare_params(w_in, w_hid, w_out, dtype=jnp.bfloat16):
    """Pad all weight dims to multiples of 128 and cast to bf16 once.

    Zero padding is numerically inert (no bias, relu(0) == 0, padded output
    columns are sliced away).
    """
    F, H = w_in.shape
    L = w_hid.shape[0]
    O = w_out.shape[1]
    F_pad = next_multiple(F, 128)
    H_pad = next_multiple(H, 128)
    O_pad = next_multiple(O, 128)

    w_in_p = jnp.zeros((F_pad, H_pad), dtype).at[:F, :H].set(w_in.astype(dtype))
    if L > 0:
        w_hid_p = jnp.zeros((L, H_pad, H_pad), dtype).at[:, :H, :H].set(
            w_hid.astype(dtype))
    else:
        w_hid_p = jnp.zeros((0, H_pad, H_pad), dtype)
    w_out_p = jnp.zeros((H_pad, O_pad), dtype).at[:H, :O].set(w_out.astype(dtype))
    return w_in_p, w_hid_p, w_out_p


# ---------------------------------------------------------------------------
# Forward wrapper
# ---------------------------------------------------------------------------

def _vmem_budget_bytes() -> int:
    """Generation-aware scoped-VMEM budget with headroom for Mosaic scratch."""
    try:
        cap = int(pltpu.get_tpu_info().vmem_capacity_bytes)
    except Exception:                     # non-TPU / older runtimes
        cap = 64 * 1024 * 1024            # conservative (v7x physical)
    # Leave ~24 MiB for Mosaic internal scratch; never budget above 100 MiB.
    return max(16 * 1024 * 1024, min(cap - 24 * 1024 * 1024, 100 * 1024 * 1024))


@functools.partial(jax.jit, static_argnames=("output_dim",))
def basicnet_forward(x, w_in_p, w_hid_p, w_out_p, *, output_dim: int):
    """x: (B, C, H, W) float32; prepared bf16 weights -> (B, output_dim) f32."""
    B = x.shape[0]
    x_flat = x.reshape(B, -1)                       # == x.view(x.shape[0], -1)
    F = x_flat.shape[1]
    F_pad, H_pad = w_in_p.shape
    O_pad = w_out_p.shape[1]
    L = w_hid_p.shape[0]
    assert F <= F_pad and w_out_p.shape[0] == H_pad, "weights not prepared"

    if F_pad != F:
        x_flat = jnp.pad(x_flat, ((0, 0), (0, F_pad - F)))

    budget = _vmem_budget_bytes()

    # ---- batch tiling --------------------------------------------------
    B_pad0 = next_multiple(max(B, 16), 16)          # >= bf16 sublane pack
    if B_pad0 <= 16:
        TB = B_pad0
    elif B_pad0 <= 1024:
        TB = next_multiple(B_pad0 // 2, 16)         # >= 2 tiles -> both v7x TCs
    else:
        TB = 512                                    # above roofline crossover

    def fixed_bytes(tb):
        return (2 * tb * F_pad * 4        # f32 x tile      (double buffered)
                + 2 * F_pad * H_pad * 2   # w_in            (2 bufs allocated)
                + 2 * H_pad * O_pad * 2   # w_out           (2 bufs allocated)
                + 2 * tb * O_pad * 4      # f32 out tile    (double buffered)
                + tb * H_pad * 2)         # bf16 activation scratch

    # Back off TB if the fixed working set does not fit the budget.
    # TODO(synk): very large input features would additionally need K-axis
    # tiling of the in-projection; not implemented.
    while TB > 16 and fixed_bytes(TB) + 2 * H_pad * H_pad * 2 > budget:
        TB = max(16, next_multiple(TB // 2, 16))

    B_pad = next_multiple(B_pad0, TB)
    nb = B_pad // TB
    if B_pad != B:
        x_flat = jnp.pad(x_flat, ((0, B_pad - B), (0, 0)))

    # ---- hidden-stack residency ----------------------------------------
    whid_resident_bytes = 2 * L * H_pad * H_pad * 2   # count 2 bufs, conservative
    whid_stream_bytes = 2 * H_pad * H_pad * 2
    resident = L > 0 and fixed_bytes(TB) + whid_resident_bytes <= budget

    whid_bytes = whid_resident_bytes if resident else whid_stream_bytes
    vmem_limit = int(min(budget,
                         max(fixed_bytes(TB) + whid_bytes + (4 << 20), 16 << 20)))

    flops = 2 * B_pad * (F_pad * H_pad + L * H_pad * H_pad + H_pad * O_pad)
    w_hid_reads = 1 if resident else nb
    bytes_accessed = (B_pad * F_pad * 4
                      + F_pad * H_pad * 2
                      + w_hid_reads * L * H_pad * H_pad * 2
                      + H_pad * O_pad * 2
                      + B_pad * O_pad * 4)
    cost = pl.CostEstimate(flops=flops, transcendentals=0,
                           bytes_accessed=bytes_accessed)

    if L > 0:
        if resident:
            # Whole (L, H, H) stack resident; constant index_map -> one DMA.
            w_hid_spec = pl.BlockSpec((L, H_pad, H_pad), lambda b, l: (0, 0, 0))
        else:
            # Stream one (H, H) layer per grid step (double-buffered).
            w_hid_spec = pl.BlockSpec(
                (1, H_pad, H_pad), lambda b, l: (jnp.maximum(l - 1, 0), 0, 0))

        out_padded = pl.pallas_call(
            functools.partial(_mlp_kernel, resident_hidden=resident),
            out_shape=jax.ShapeDtypeStruct((B_pad, O_pad), jnp.float32),
            grid_spec=pltpu.PrefetchScalarGridSpec(
                num_scalar_prefetch=0,
                grid=(nb, L + 1),
                in_specs=[
                    pl.BlockSpec((TB, F_pad), lambda b, l: (b, 0)),
                    pl.BlockSpec((F_pad, H_pad), lambda b, l: (0, 0)),
                    w_hid_spec,
                    pl.BlockSpec((H_pad, O_pad), lambda b, l: (0, 0)),
                ],
                out_specs=pl.BlockSpec((TB, O_pad), lambda b, l: (b, 0)),
                scratch_shapes=[pltpu.VMEM((TB, H_pad), jnp.bfloat16)],
            ),
            compiler_params=pltpu.CompilerParams(
                dimension_semantics=("parallel", "arbitrary"),
                vmem_limit_bytes=vmem_limit,
            ),
            cost_estimate=cost,
        )(x_flat, w_in_p, w_hid_p, w_out_p)
    else:
        out_padded = pl.pallas_call(
            _mlp_kernel_no_hidden,
            out_shape=jax.ShapeDtypeStruct((B_pad, O_pad), jnp.float32),
            grid_spec=pltpu.PrefetchScalarGridSpec(
                num_scalar_prefetch=0,
                grid=(nb,),
                in_specs=[
                    pl.BlockSpec((TB, F_pad), lambda b: (b, 0)),
                    pl.BlockSpec((F_pad, H_pad), lambda b: (0, 0)),
                    pl.BlockSpec((H_pad, O_pad), lambda b: (0, 0)),
                ],
                out_specs=pl.BlockSpec((TB, O_pad), lambda b: (b, 0)),
            ),
            compiler_params=pltpu.CompilerParams(
                dimension_semantics=("parallel",),
                vmem_limit_bytes=vmem_limit,
            ),
            cost_estimate=cost,
        )(x_flat, w_in_p, w_out_p)

    return out_padded[:B, :output_dim]             # [..., :self.output_dim]


# ---------------------------------------------------------------------------
# Params + reference
# ---------------------------------------------------------------------------

def init_params(key, in_features, hidden_dim, num_layers, output_dim):
    o_pad = next_multiple(output_dim, base=128)
    k1, k2, k3 = jax.random.split(key, 3)
    w_in = jax.random.normal(k1, (in_features, hidden_dim), jnp.float32)
    w_in = w_in * (1.0 / jnp.sqrt(in_features))
    w_hid = jax.random.normal(
        k2, (max(num_layers, 1), hidden_dim, hidden_dim), jnp.float32
    ) * (1.0 / jnp.sqrt(hidden_dim))
    w_hid = w_hid[:num_layers]                     # handles num_layers == 0
    w_out_core = jax.random.normal(k3, (hidden_dim, output_dim), jnp.float32)
    w_out_core = w_out_core * (1.0 / jnp.sqrt(hidden_dim))
    w_out = jnp.zeros((hidden_dim, o_pad), jnp.float32)
    w_out = w_out.at[:, :output_dim].set(w_out_core)
    return w_in, w_hid, w_out


def reference_forward(x, w_in, w_hid, w_out, output_dim):
    """Pure-JAX reference with the same bf16-operand / f32-accum numerics."""
    cast = jnp.bfloat16
    h = x.reshape(x.shape[0], -1).astype(cast)
    h = jnp.dot(h, w_in.astype(cast), preferred_element_type=jnp.float32)
    h = jnp.maximum(h, 0.0).astype(cast)
    for i in range(w_hid.shape[0]):
        h = jnp.dot(h, w_hid[i].astype(cast), preferred_element_type=jnp.float32)
        h = jnp.maximum(h, 0.0).astype(cast)
    out = jnp.dot(h, w_out.astype(cast), preferred_element_type=jnp.float32)
    return out[..., :output_dim]


if __name__ == "__main__":
    key = jax.random.PRNGKey(0)
    kx, kp = jax.random.split(key)

    # Small shapes consistent with the module: sample (C,H,W) = (4,16,16)
    B, C, Himg, Wimg = 2, 4, 16, 16
    num_layers = 2
    hidden_dim = 128
    output_dim = 10
    in_features = C * Himg * Wimg                  # sample[0].numel()

    x = jax.random.normal(kx, (B, C, Himg, Wimg), jnp.float32)
    w_in, w_hid, w_out = init_params(kp, in_features, hidden_dim,
                                     num_layers, output_dim)

    # One-off weight padding + bf16 cast (kept out of the forward path).
    w_in_p, w_hid_p, w_out_p = prepare_params(w_in, w_hid, w_out)

    out = basicnet_forward(x, w_in_p, w_hid_p, w_out_p, output_dim=output_dim)
    out = jax.block_until_ready(out)
    assert out.shape == (B, output_dim), out.shape

    ref = reference_forward(x, w_in, w_hid, w_out, output_dim)
    assert jnp.allclose(out, ref, atol=2e-2, rtol=2e-2), "mismatch vs JAX reference"

    print("KERNEL_OK")
</pallas_src>

<mosaic_0001>
module attributes {stable_mosaic.version = 11 : i64} {
  func.func @_mlp_kernel(%arg0: i32, %arg1: i32, %arg2: memref<16x1024xf32, #tpu.memory_space<vmem>>, %arg3: memref<1024x128xbf16, #tpu.memory_space<vmem>>, %arg4: memref<2x128x128xbf16, #tpu.memory_space<vmem>>, %arg5: memref<128x128xbf16, #tpu.memory_space<vmem>>, %arg6: memref<16x128xf32, #tpu.memory_space<vmem>>, %arg7: memref<16x128xbf16, #tpu.memory_space<vmem>>) attributes {dimension_semantics = [#tpu.dimension_semantics<parallel>, #tpu.dimension_semantics<arbitrary>], iteration_bounds = array<i64: 1, 3>, scalar_prefetch = 0 : i64, scratch_operands = 1 : i64, tpu.core_type = #tpu.core_type<tc>, window_params = [{transform_indices = @transform_0, window_bounds = array<i64: 16, 1024>}, {pipeline_mode = #tpu.pipeline_mode<synchronous>, transform_indices = @transform_1, window_bounds = array<i64: 1024, 128>}, {pipeline_mode = #tpu.pipeline_mode<synchronous>, transform_indices = @transform_2, window_bounds = array<i64: 2, 128, 128>}, {pipeline_mode = #tpu.pipeline_mode<synchronous>, transform_indices = @transform_3, window_bounds = array<i64: 128, 128>}, {transform_indices = @transform_4, window_bounds = array<i64: 16, 128>}]} {
    %c0_i32 = arith.constant 0 : i32
    %0 = arith.cmpi eq, %arg1, %c0_i32 : i32
    %1 = arith.extui %0 : i1 to i32
    %c0_i32_0 = arith.constant 0 : i32
    %2 = arith.cmpi ne, %1, %c0_i32_0 : i32
    scf.if %2 {
      %c0 = arith.constant 0 : index
      %c0_3 = arith.constant 0 : index
      %6 = vector.load %arg2[%c0, %c0_3] : memref<16x1024xf32, #tpu.memory_space<vmem>>, vector<16x1024xf32>
      %7 = arith.truncf %6 : vector<16x1024xf32> to vector<16x1024xbf16>
      %c0_4 = arith.constant 0 : index
      %c0_5 = arith.constant 0 : index
      %8 = vector.load %arg3[%c0_4, %c0_5] : memref<1024x128xbf16, #tpu.memory_space<vmem>>, vector<1024x128xbf16>
      %cst = arith.constant dense<0.000000e+00> : vector<16x128xf32>
      %9 = tpu.matmul %7, %8, %cst {dimension_numbers = #tpu.dot_dimension_numbers<[1], [0], [0], [1], [0, 0, 1, 1], [], []>} : vector<16x1024xbf16>, vector<1024x128xbf16>, vector<16x128xf32> -> vector<16x128xf32>
      %cst_6 = arith.constant 0.000000e+00 : f32
      %10 = vector.broadcast %cst_6 : f32 to vector<16x128xf32>
      %11 = arith.maximumf %9, %10 : vector<16x128xf32>
      %12 = arith.truncf %11 : vector<16x128xf32> to vector<16x128xbf16>
      %c0_7 = arith.constant 0 : index
      %c0_8 = arith.constant 0 : index
      %13 = vector.load %arg7[%c0_7, %c0_8] : memref<16x128xbf16, #tpu.memory_space<vmem>>, vector<16x128xbf16>
      tpu.vector_store %arg7[%c0_7, %c0_8], %12 {strides = array<i32>} : memref<16x128xbf16, #tpu.memory_space<vmem>>, vector<16x128xbf16>,
    } else {
    }
    %c0_i32_1 = arith.constant 0 : i32
    %3 = arith.cmpi sgt, %arg1, %c0_i32_1 : i32
    %4 = arith.extui %3 : i1 to i32
    %c0_i32_2 = arith.constant 0 : i32
    %5 = arith.cmpi ne, %4, %c0_i32_2 : i32
    scf.if %5 {
      %c1_i32 = arith.constant 1 : i32
      %6 = arith.subi %arg1, %c1_i32 : i32
      %c0_i32_3 = arith.constant 0 : i32
      %7 = arith.maxsi %6, %c0_i32_3 : i32
      %8 = arith.index_cast %7 : i32 to index
      %c0 = arith.constant 0 : index
      %c0_4 = arith.constant 0 : index
      %9 = vector.load %arg4[%8, %c0, %c0_4] : memref<2x128x128xbf16, #tpu.memory_space<vmem>>, vector<1x128x128xbf16>
      %10 = vector.shape_cast %9 : vector<1x128x128xbf16> to vector<128x128xbf16>
      %c0_5 = arith.constant 0 : index
      %c0_6 = arith.constant 0 : index
      %11 = vector.load %arg7[%c0_5, %c0_6] : memref<16x128xbf16, #tpu.memory_space<vmem>>, vector<16x128xbf16>
      %cst = arith.constant dense<0.000000e+00> : vector<16x128xf32>
      %12 = tpu.matmul %11, %10, %cst {dimension_numbers = #tpu.dot_dimension_numbers<[1], [0], [0], [1], [0, 0, 1, 1], [], []>} : vector<16x128xbf16>, vector<128x128xbf16>, vector<16x128xf32> -> vector<16x128xf32>
      %cst_7 = arith.constant 0.000000e+00 : f32
      %13 = vector.broadcast %cst_7 : f32 to vector<16x128xf32>
      %14 = arith.maximumf %12, %13 : vector<16x128xf32>
      %15 = arith.truncf %14 : vector<16x128xf32> to vector<16x128xbf16>
      %c2_i32 = arith.constant 2 : i32
      %16 = arith.cmpi slt, %arg1, %c2_i32 : i32
      %17 = arith.extui %16 : i1 to i32
      %c0_i32_8 = arith.constant 0 : i32
      %18 = arith.cmpi ne, %17, %c0_i32_8 : i32
      scf.if %18 {
        %c0_11 = arith.constant 0 : index
        %c0_12 = arith.constant 0 : index
        %22 = vector.load %arg7[%c0_11, %c0_12] : memref<16x128xbf16, #tpu.memory_space<vmem>>, vector<16x128xbf16>
        tpu.vector_store %arg7[%c0_11, %c0_12], %15 {strides = array<i32>} : memref<16x128xbf16, #tpu.memory_space<vmem>>, vector<16x128xbf16>,
      } else {
      }
      %c2_i32_9 = arith.constant 2 : i32
      %19 = arith.cmpi eq, %arg1, %c2_i32_9 : i32
      %20 = arith.extui %19 : i1 to i32
      %c0_i32_10 = arith.constant 0 : i32
      %21 = arith.cmpi ne, %20, %c0_i32_10 : i32
      scf.if %21 {
        %c0_11 = arith.constant 0 : index
        %c0_12 = arith.constant 0 : index
        %22 = vector.load %arg5[%c0_11, %c0_12] : memref<128x128xbf16, #tpu.memory_space<vmem>>, vector<128x128xbf16>
        %cst_13 = arith.constant dense<0.000000e+00> : vector<16x128xf32>
        %23 = tpu.matmul %15, %22, %cst_13 {dimension_numbers = #tpu.dot_dimension_numbers<[1], [0], [0], [1], [0, 0, 1, 1], [], []>} : vector<16x128xbf16>, vector<128x128xbf16>, vector<16x128xf32> -> vector<16x128xf32>
        %c0_14 = arith.constant 0 : index
        %c0_15 = arith.constant 0 : index
        %24 = vector.load %arg6[%c0_14, %c0_15] : memref<16x128xf32, #tpu.memory_space<vmem>>, vector<16x128xf32>
        tpu.vector_store %arg6[%c0_14, %c0_15], %23 {strides = array<i32>} : memref<16x128xf32, #tpu.memory_space<vmem>>, vector<16x128xf32>,
      } else {
      }
    } else {
    }
    return
  }
  func.func @transform_0(%arg0: i32, %arg1: i32) -> (i32, i32) {
    %c0_i32 = arith.constant 0 : i32
    %c0_i32_0 = arith.constant 0 : i32
    return %arg0, %c0_i32 : i32, i32
  }
  func.func @transform_1(%arg0: i32, %arg1: i32) -> (i32, i32) {
    %c0_i32 = arith.constant 0 : i32
    %c0_i32_0 = arith.constant 0 : i32
    %c0_i32_1 = arith.constant 0 : i32
    return %c0_i32, %c0_i32_0 : i32, i32
  }
  func.func @transform_2(%arg0: i32, %arg1: i32) -> (i32, i32, i32) {
    %c0_i32 = arith.constant 0 : i32
    %c0_i32_0 = arith.constant 0 : i32
    %c0_i32_1 = arith.constant 0 : i32
    %c0_i32_2 = arith.constant 0 : i32
    return %c0_i32, %c0_i32_0, %c0_i32_1 : i32, i32, i32
  }
  func.func @transform_3(%arg0: i32, %arg1: i32) -> (i32, i32) {
    %c0_i32 = arith.constant 0 : i32
    %c0_i32_0 = arith.constant 0 : i32
    %c0_i32_1 = arith.constant 0 : i32
    return %c0_i32, %c0_i32_0 : i32, i32
  }
  func.func @transform_4(%arg0: i32, %arg1: i32) -> (i32, i32) {
    %c0_i32 = arith.constant 0 : i32
    %c0_i32_0 = arith.constant 0 : i32
    return %arg0, %c0_i32 : i32, i32
  }
}

</mosaic_0001>

<llo_original>
// kernel: basicnet_forward.1
$region0: #{basicnet_forward.1}
  #allocation0 [shape = 'u32[]', space=smem, size = 0x4, offset = 0x4, fixed_abs, tag = 'smem constant byte address 0x4 - core index']
  #allocation1 [shape = 'u32[144,128]{1,0:T(1,128)}', space=vmem, size = 0x12000, scoped, tag = 'internal scratch']
  #allocation2 [shape = 'bf16[16,128]{1,0:T(16,128)(2,1)}', space=vmem, size = 0x1000, scoped, tag = 'scratch operand']
  %s0 = inlined_call_operand.vmem [shape: f32[16,1024], index: 0, kind: input, shape index: {}]
  %s1 = inlined_call_operand.hbm [shape: bf16[1024,128], index: 1, kind: input, shape index: {}]
  %s2 = inlined_call_operand.vmem [shape: bf16[2,128,128], index: 2, kind: input, shape index: {}]
  %s3 = inlined_call_operand.vmem [shape: bf16[128,128], index: 3, kind: input, shape index: {}]
  %s4 = inlined_call_operand.vmem [shape: f32[16,128], index: 4, kind: output, shape index: {}]
  %s5 = sld [smem:[#allocation0]]
  $region69: #{basicnet_forward.1} parent=0
    _
  %s7 = ssub.s32 1, %s5
  %s8 = scalar_select 0, %s7, %s5
  $region1: #{basicnet_forward.1} parent=0
    #allocation3 [shape = 'u8[262144]{0}', space=vmem, size = 0x40000, scoped, tag = 'input window, operand 1, single buffered']
    #allocation4 [shape = 's32[2]{0}', space=sflag, size = 0x8, scoped, tag = 'scoped memory for basicnet_forward.1']
    %9 = vsyncpa [#allocation4], 0
    loop: start=0, step=1, limit=5
    $region2: #{basicnet_forward.1} parent=1 // loop_pre_header
      _
    $region3: #{basicnet_forward.1} parent=1 // loop_header
      %s11 = sphi 0, %s15
      %p12 = scmp.ge.s32.totalorder %s11, 5
      %s18 = sphi 0, %s30
      %s19 = sphi 0, %s26
      %s20 = sphi 0, %s18
      %s21 = sphi 0, %s19
      %s22 = sphi 0, %s20
      %s23 = sphi 0, %s21
      %s33 = sphi 0, %s35
      %s36 = sphi 0, %s33
      %s37 = sphi 0, %s36
      %s53 = sphi 0, %s37
      %s57 = sphi 0, %s57
      %s59 = sphi 0, %s57
      %s60 = sphi 0, %s59
      %s74 = sphi 0, %s60
      %s78 = sphi 0, %s78
      %s80 = sphi 0, %s78
      %s81 = sphi 0, %s80
      %s95 = sphi 0, %s81
      %s99 = sphi 0, %s99
      %s101 = sphi 0, %s99
      %s102 = sphi 0, %s101
      %s116 = sphi 0, %s102
      %s122 = sphi 0, %s124
      %s125 = sphi 0, %s122
      %s126 = sphi 0, %s125
      %s142 = sphi 0, %s126
    $region4: #{basicnet_forward.1} parent=1 // loop_header_branch
      %14 = sbr.rel (%p12) target = $region8
    $region5: #{basicnet_forward.1} parent=1 // loop_body
      %s16 = ssub.s32 %s11, 1
      %s17 = ssub.s32 %s11, 2
      %s24 = sadd.s32 1, %s19
      %p25 = scmp.ge.s32.totalorder %s24, 3
      %s26 = scalar_select %p25, 0, %s24
      %s27 = sadd.s32 1, %s18
      %s28 = scalar_select %p25, %s27, %s18
      %p29 = scmp.ge.s32.totalorder %s28, 1
      %s30 = scalar_select %p29, 0, %s28
      %s31 = ssub.s32 %s18, %s30
      %p32 = scmp.eq.s32.totalorder %s31, 0
      %s34 = sadd.s32 %s33, 1
      %s35 = scalar_select %p32, %s33, %s34
      %p38 = pneg %p32
      %p39 = scmp.eq.s32.totalorder %s11, 2
      %p40 = por %p38, %p39
      %p41 = scmp.ne.s32.totalorder %s33, %s36
      %p42 = scmp.eq.s32.totalorder %s11, 0
      %p43 = por %p41, %p42
      %p44 = scmp.ne.s32.totalorder %s33, %s36
      %p45 = scmp.eq.s32.totalorder %s16, 2
      %p46 = por %p44, %p45
      %p47 = scmp.ne.s32.totalorder %s36, %s37
      %p48 = scmp.eq.s32.totalorder %s16, 0
      %p49 = por %p47, %p48
      %p50 = scmp.ne.s32.totalorder %s36, %s37
      %p51 = scmp.eq.s32.totalorder %s17, 2
      %p52 = por %p50, %p51
      %p54 = scmp.ne.s32.totalorder %s37, %s53
      %p55 = scmp.eq.s32.totalorder %s17, 0
      %p56 = por %p54, %p55
      %s58 = sadd.s32 %s57, 1
      %p61 = scmp.eq.s32.totalorder %s11, 2
      %p62 = scmp.ne.s32.totalorder %s57, %s59
      %p63 = scmp.eq.s32.totalorder %s11, 0
      %p64 = por %p62, %p63
      %p65 = scmp.ne.s32.totalorder %s57, %s59
      %p66 = scmp.eq.s32.totalorder %s16, 2
      %p67 = por %p65, %p66
      %p68 = scmp.ne.s32.totalorder %s59, %s60
      %p69 = scmp.eq.s32.totalorder %s16, 0
      %p70 = por %p68, %p69
      %p71 = scmp.ne.s32.totalorder %s59, %s60
      %p72 = scmp.eq.s32.totalorder %s17, 2
      %p73 = por %p71, %p72
      %p75 = scmp.ne.s32.totalorder %s60, %s74
      %p76 = scmp.eq.s32.totalorder %s17, 0
      %p77 = por %p75, %p76
      %s79 = sadd.s32 %s78, 1
      %p82 = scmp.eq.s32.totalorder %s11, 2
      %p83 = scmp.ne.s32.totalorder %s78, %s80
      %p84 = scmp.eq.s32.totalorder %s11, 0
      %p85 = por %p83, %p84
      %p86 = scmp.ne.s32.totalorder %s78, %s80
      %p87 = scmp.eq.s32.totalorder %s16, 2
      %p88 = por %p86, %p87
      %p89 = scmp.ne.s32.totalorder %s80, %s81
      %p90 = scmp.eq.s32.totalorder %s16, 0
      %p91 = por %p89, %p90
      %p92 = scmp.ne.s32.totalorder %s80, %s81
      %p93 = scmp.eq.s32.totalorder %s17, 2
      %p94 = por %p92, %p93
      %p96 = scmp.ne.s32.totalorder %s81, %s95
      %p97 = scmp.eq.s32.totalorder %s17, 0
      %p98 = por %p96, %p97
      %s100 = sadd.s32 %s99, 1
      %p103 = scmp.eq.s32.totalorder %s11, 2
      %p104 = scmp.ne.s32.totalorder %s99, %s101
      %p105 = scmp.eq.s32.totalorder %s11, 0
      %p106 = por %p104, %p105
      %p107 = scmp.ne.s32.totalorder %s99, %s101
      %p108 = scmp.eq.s32.totalorder %s16, 2
      %p109 = por %p107, %p108
      %p110 = scmp.ne.s32.totalorder %s101, %s102
      %p111 = scmp.eq.s32.totalorder %s16, 0
      %p112 = por %p110, %p111
      %p113 = scmp.ne.s32.totalorder %s101, %s102
      %p114 = scmp.eq.s32.totalorder %s17, 2
      %p115 = por %p113, %p114
      %p117 = scmp.ne.s32.totalorder %s102, %s116
      %p118 = scmp.eq.s32.totalorder %s17, 0
      %p119 = por %p117, %p118
      %s120 = ssub.s32 %s18, %s30
      %p121 = scmp.eq.s32.totalorder %s120, 0
      %s123 = sadd.s32 %s122, 1
      %s124 = scalar_select %p121, %s122, %s123
      %p127 = pneg %p121
      %p128 = scmp.eq.s32.totalorder %s11, 2
      %p129 = por %p127, %p128
      %p130 = scmp.ne.s32.totalorder %s122, %s125
      %p131 = scmp.eq.s32.totalorder %s11, 0
      %p132 = por %p130, %p131
      %p133 = scmp.ne.s32.totalorder %s122, %s125
      %p134 = scmp.eq.s32.totalorder %s16, 2
      %p135 = por %p133, %p134
      %p136 = scmp.ne.s32.totalorder %s125, %s126
      %p137 = scmp.eq.s32.totalorder %s16, 0
      %p138 = por %p136, %p137
      %p139 = scmp.ne.s32.totalorder %s125, %s126
      %p140 = scmp.eq.s32.totalorder %s17, 2
      %p141 = por %p139, %p140
      %p143 = scmp.ne.s32.totalorder %s126, %s142
      %p144 = scmp.eq.s32.totalorder %s17, 0
      %p145 = por %p143, %p144
      %p146 = scmp.le.s32.totalorder 1, %s11
      %p147 = scmp.lt.s32.totalorder %s11, 4
      %p148 = pnand %p146, %p147
      %p149 = pneg %p148
      // Predicated region
      $region9: #{basicnet_forward.1} parent=5 // pred_check
        _
      $region10: #{basicnet_forward.1} parent=5 // pred_check_branch
        %151 = sbr.rel (%p148) target = $region12
      $region11: #{basicnet_forward.1} parent=5 // pred_region
        %s152 = ssub.s32 %s11, 1
        // Predicated region
        $region13: #{basicnet_forward.1} parent=11 // pred_check
          %p153 = pneg %p49
        $region14: #{basicnet_forward.1} parent=11 // pred_check_branch
          %155 = sbr.rel (%p153) target = $region16
        $region15: #{basicnet_forward.1} parent=11 // pred_region
          %s156 = smul.u32 2, %s20
          %p157 = scmp.lt.s32.totalorder %s156, 1
          %s158 = scalar_select %p157, %s156, 1
          %s159 = smul.addr %s158, 8
          %s160 = smul.addr %s159, 8
          %s161 = scalar_lea.vmem %s0, %s160
          %s162 = smul.u32 2, %s20
        $region16: #{basicnet_forward.1} parent=11 // pred_fallthru
          _
        // Predicated region
        $region17: #{basicnet_forward.1} parent=11 // pred_check
          %p163 = pneg %p70
        $region18: #{basicnet_forward.1} parent=11 // pred_check_branch
          %165 = sbr.rel (%p163) target = $region20
        $region19: #{basicnet_forward.1} parent=11 // pred_region
          %s167 = ssub.s32 8192, 8192
          %168 = vsyncadd [#allocation4], %s167
          %s169 = sshll.u32 [#allocation3], 4
          %s170 = int_to_ptr.vmem [resolvable:$true] %s169
          %175 = dma.hbm_to_vmem [thread:$0]  %s1, 8192, %s170, [#allocation4], 64, 64, 4
        $region20: #{basicnet_forward.1} parent=11 // pred_fallthru
          _
        // Predicated region
        $region21: #{basicnet_forward.1} parent=11 // pred_check
          %p176 = pneg %p91
        $region22: #{basicnet_forward.1} parent=11 // pred_check_branch
          %178 = sbr.rel (%p176) target = $region24
        $region23: #{basicnet_forward.1} parent=11 // pred_region
          _
        $region24: #{basicnet_forward.1} parent=11 // pred_fallthru
          _
        // Predicated region
        $region25: #{basicnet_forward.1} parent=11 // pred_check
          %p179 = pneg %p112
        $region26: #{basicnet_forward.1} parent=11 // pred_check_branch
          %181 = sbr.rel (%p179) target = $region28
        $region27: #{basicnet_forward.1} parent=11 // pred_region
          _
        $region28: #{basicnet_forward.1} parent=11 // pred_fallthru
          _
      $region12: #{basicnet_forward.1} parent=5 // pred_fallthru
        _
      %p182 = scmp.lt.s32.totalorder %s11, 3
      // Predicated region
      $region29: #{basicnet_forward.1} parent=5 // pred_check
        %p183 = pneg %p182
      $region30: #{basicnet_forward.1} parent=5 // pred_check_branch
        %185 = sbr.rel (%p183) target = $region32
      $region31: #{basicnet_forward.1} parent=5 // pred_region
        _
      $region32: #{basicnet_forward.1} parent=5 // pred_fallthru
        _
      %p186 = scmp.le.s32.totalorder 1, %s11
      %p187 = scmp.lt.s32.totalorder %s11, 4
      %p188 = pnand %p186, %p187
      %p189 = pneg %p188
      // Predicated region
      $region33: #{basicnet_forward.1} parent=5 // pred_check
        _
      $region34: #{basicnet_forward.1} parent=5 // pred_check_branch
        %191 = sbr.rel (%p188) target = $region36
      $region35: #{basicnet_forward.1} parent=5 // pred_region
        %s192 = ssub.s32 %s11, 1
        // Predicated region
        $region37: #{basicnet_forward.1} parent=35 // pred_check
          %p193 = pneg %p70
        $region38: #{basicnet_forward.1} parent=35 // pred_check_branch
          %195 = sbr.rel (%p193) target = $region40
        $region39: #{basicnet_forward.1} parent=35 // pred_region
          %196 = dma.done [#allocation4], 8192
        $region40: #{basicnet_forward.1} parent=35 // pred_fallthru
          _
        %s197 = smul.u32 2, %s20
        %p198 = scmp.lt.s32.totalorder %s197, 1
        %s199 = scalar_select %p198, %s197, 1
        %s200 = smul.addr %s199, 8
        %s201 = smul.addr %s200, 8
        %s202 = scalar_lea.vmem %s0, %s201
        %p203 = pneg %p49
        %p204 = pneg %p46
        %p205 = pneg %p70
        %p206 = pneg %p67
        %p207 = pneg %p91
        %p208 = pneg %p88
        %p209 = pneg %p112
        %p210 = pneg %p109
        %p211 = pneg %p138
        %p212 = pneg %p135
        %s213 = smul.u32 2, %s20
        %p214 = scmp.lt.s32.totalorder %s213, 1
        %s215 = scalar_select %p214, %s213, 1
        %s216 = smul.addr %s215, 8
        %s217 = scalar_lea.vmem %s4, %s216
        %s218 = smul.u32 2, %s20
        %p219 = scmp.lt.s32.totalorder %s218, 1
        %s220 = scalar_select %p219, %s218, 1
        %s221 = smul.addr %s220, 8
        %s222 = smul.addr %s221, 8
        %s223 = scalar_lea.vmem %s0, %s222
        %s224 = smul.u32 2, %s20
        %s225 = smul.u32 2, %s20
        %p226 = scmp.lt.s32.totalorder %s225, 1
        %s227 = scalar_select %p226, %s225, 1
        %s228 = smul.addr %s227, 8
        %s229 = scalar_lea.vmem %s4, %s228
        %s230 = smul.u32 2, %s20
        %p232 = scmp.eq.s32.totalorder %s21, 0
        // Predicated region
        $region41: #{basicnet_forward.1} parent=35 // pred_check
          %p233 = pneg %p232
        $region42: #{basicnet_forward.1} parent=35 // pred_check_branch
          %235 = sbr.rel (%p233) target = $region44
        $region43: #{basicnet_forward.1} parent=35 // pred_region
          %v236 = vld [vmem:[%s223] sm:$0xff]
          %v237 = vld [vmem:[%s223 + $0x8] sm:$0xff]
          %v238 = vld [vmem:[%s223 + $0x10] sm:$0xff]
          %v239 = vld [vmem:[%s223 + $0x18] sm:$0xff]
          %v240 = vld [vmem:[%s223 + $0x20] sm:$0xff]
          %v241 = vld [vmem:[%s223 + $0x28] sm:$0xff]
          %v242 = vld [vmem:[%s223 + $0x30] sm:$0xff]
          %v243 = vld [vmem:[%s223 + $0x38] sm:$0xff]
          %v244 = vld [vmem:[%s223 + $0x40] sm:$0xff]
          %v245 = vld [vmem:[%s223 + $0x48] sm:$0xff]
          %v246 = vld [vmem:[%s223 + $0x50] sm:$0xff]
          %v247 = vld [vmem:[%s223 + $0x58] sm:$0xff]
          %v248 = vld [vmem:[%s223 + $0x60] sm:$0xff]
          %v249 = vld [vmem:[%s223 + $0x68] sm:$0xff]
          %v250 = vld [vmem:[%s223 + $0x70] sm:$0xff]
          %v251 = vld [vmem:[%s223 + $0x78] sm:$0xff]
          %v252 = vpack.c.bf16 %v244, %v236
          %v253 = vpack.c.bf16 %v245, %v237
          %v254 = vpack.c.bf16 %v246, %v238
          %v255 = vpack.c.bf16 %v247, %v239
          %v256 = vpack.c.bf16 %v248, %v240
          %v257 = vpack.c.bf16 %v249, %v241
          %v258 = vpack.c.bf16 %v250, %v242
          %v259 = vpack.c.bf16 %v251, %v243
          %v260 = vld [vmem:[#allocation3] sm:$0xf]
          %v261 = vld [vmem:[#allocation3 + $0x4] sm:$0xf]
          %v262 = vld [vmem:[#allocation3 + $0x8] sm:$0xf]
          %v263 = vld [vmem:[#allocation3 + $0xc] sm:$0xf]
          %v264 = vld [vmem:[#allocation3 + $0x10] sm:$0xf]
          %v265 = vld [vmem:[#allocation3 + $0x14] sm:$0xf]
          %v266 = vld [vmem:[#allocation3 + $0x18] sm:$0xf]
          %v267 = vld [vmem:[#allocation3 + $0x1c] sm:$0xf]
          %v268 = vld [vmem:[#allocation3 + $0x20] sm:$0xf]
          %v269 = vld [vmem:[#allocation3 + $0x24] sm:$0xf]
          %v270 = vld [vmem:[#allocation3 + $0x28] sm:$0xf]
          %v271 = vld [vmem:[#allocation3 + $0x2c] sm:$0xf]
          %v272 = vld [vmem:[#allocation3 + $0x30] sm:$0xf]
          %v273 = vld [vmem:[#allocation3 + $0x34] sm:$0xf]
          %v274 = vld [vmem:[#allocation3 + $0x38] sm:$0xf]
          %v275 = vld [vmem:[#allocation3 + $0x3c] sm:$0xf]
          %v276 = vld [vmem:[#allocation3 + $0x40] sm:$0xf]
          %v277 = vld [vmem:[#allocation3 + $0x44] sm:$0xf]
          %v278 = vld [vmem:[#allocation3 + $0x48] sm:$0xf]
          %v279 = vld [vmem:[#allocation3 + $0x4c] sm:$0xf]
          %v280 = vld [vmem:[#allocation3 + $0x50] sm:$0xf]
          %v281 = vld [vmem:[#allocation3 + $0x54] sm:$0xf]
          %v282 = vld [vmem:[#allocation3 + $0x58] sm:$0xf]
          %v283 = vld [vmem:[#allocation3 + $0x5c] sm:$0xf]
          %v284 = vld [vmem:[#allocation3 + $0x60] sm:$0xf]
          %v285 = vld [vmem:[#allocation3 + $0x64] sm:$0xf]
          %v286 = vld [vmem:[#allocation3 + $0x68] sm:$0xf]
          %v287 = vld [vmem:[#allocation3 + $0x6c] sm:$0xf]
          %v288 = vld [vmem:[#allocation3 + $0x70] sm:$0xf]
          %v289 = vld [vmem:[#allocation3 + $0x74] sm:$0xf]
          %v290 = vld [vmem:[#allocation3 + $0x78] sm:$0xf]
          %v291 = vld [vmem:[#allocation3 + $0x7c] sm:$0xf]
          %v292 = vld [vmem:[#allocation3 + $0x80] sm:$0xf]
          %v293 = vld [vmem:[#allocation3 + $0x84] sm:$0xf]
          %v294 = vld [vmem:[#allocation3 + $0x88] sm:$0xf]
          %v295 = vld [vmem:[#allocation3 + $0x8c] sm:$0xf]
          %v296 = vld [vmem:[#allocation3 + $0x90] sm:$0xf]
          %v297 = vld [vmem:[#allocation3 + $0x94] sm:$0xf]
          %v298 = vld [vmem:[#allocation3 + $0x98] sm:$0xf]
          %v299 = vld [vmem:[#allocation3 + $0x9c] sm:$0xf]
          %v300 = vld [vmem:[#allocation3 + $0xa0] sm:$0xf]
          %v301 = vld [vmem:[#allocation3 + $0xa4] sm:$0xf]
          %v302 = vld [vmem:[#allocation3 + $0xa8] sm:$0xf]
          %v303 = vld [vmem:[#allocation3 + $0xac] sm:$0xf]
          %v304 = vld [vmem:[#allocation3 + $0xb0] sm:$0xf]
          %v305 = vld [vmem:[#allocation3 + $0xb4] sm:$0xf]
          %v306 = vld [vmem:[#allocation3 + $0xb8] sm:$0xf]
          %v307 = vld [vmem:[#allocation3 + $0xbc] sm:$0xf]
          %v308 = vld [vmem:[#allocation3 + $0xc0] sm:$0xf]
          %v309 = vld [vmem:[#allocation3 + $0xc4] sm:$0xf]
          %v310 = vld [vmem:[#allocation3 + $0xc8] sm:$0xf]
          %v311 = vld [vmem:[#allocation3 + $0xcc] sm:$0xf]
          %v312 = vld [vmem:[#allocation3 + $0xd0] sm:$0xf]
          %v313 = vld [vmem:[#allocation3 + $0xd4] sm:$0xf]
          %v314 = vld [vmem:[#allocation3 + $0xd8] sm:$0xf]
          %v315 = vld [vmem:[#allocation3 + $0xdc] sm:$0xf]
          %v316 = vld [vmem:[#allocation3 + $0xe0] sm:$0xf]
          %v317 = vld [vmem:[#allocation3 + $0xe4] sm:$0xf]
          %v318 = vld [vmem:[#allocation3 + $0xe8] sm:$0xf]
          %v319 = vld [vmem:[#allocation3 + $0xec] sm:$0xf]
          %v320 = vld [vmem:[#allocation3 + $0xf0] sm:$0xf]
          %v321 = vld [vmem:[#allocation3 + $0xf4] sm:$0xf]
          %v322 = vld [vmem:[#allocation3 + $0xf8] sm:$0xf]
          %v323 = vld [vmem:[#allocation3 + $0xfc] sm:$0xf]
          %v324 = vld [vmem:[#allocation3 + $0x100] sm:$0xf]
          %v325 = vld [vmem:[#allocation3 + $0x104] sm:$0xf]
          %v326 = vld [vmem:[#allocation3 + $0x108] sm:$0xf]
          %v327 = vld [vmem:[#allocation3 + $0x10c] sm:$0xf]
          %v328 = vld [vmem:[#allocation3 + $0x110] sm:$0xf]
          %v329 = vld [vmem:[#allocation3 + $0x114] sm:$0xf]
          %v330 = vld [vmem:[#allocation3 + $0x118] sm:$0xf]
          %v331 = vld [vmem:[#allocation3 + $0x11c] sm:$0xf]
          %v332 = vld [vmem:[#allocation3 + $0x120] sm:$0xf]
          %v333 = vld [vmem:[#allocation3 + $0x124] sm:$0xf]
          %v334 = vld [vmem:[#allocation3 + $0x128] sm:$0xf]
          %v335 = vld [vmem:[#allocation3 + $0x12c] sm:$0xf]
          %v336 = vld [vmem:[#allocation3 + $0x130] sm:$0xf]
          %v337 = vld [vmem:[#allocation3 + $0x134] sm:$0xf]
          %v338 = vld [vmem:[#allocation3 + $0x138] sm:$0xf]
          %v339 = vld [vmem:[#allocation3 + $0x13c] sm:$0xf]
          %v340 = vld [vmem:[#allocation3 + $0x140] sm:$0xf]
          %v341 = vld [vmem:[#allocation3 + $0x144] sm:$0xf]
          %v342 = vld [vmem:[#allocation3 + $0x148] sm:$0xf]
          %v343 = vld [vmem:[#allocation3 + $0x14c] sm:$0xf]
          %v344 = vld [vmem:[#allocation3 + $0x150] sm:$0xf]
          %v345 = vld [vmem:[#allocation3 + $0x154] sm:$0xf]
          %v346 = vld [vmem:[#allocation3 + $0x158] sm:$0xf]
          %v347 = vld [vmem:[#allocation3 + $0x15c] sm:$0xf]
          %v348 = vld [vmem:[#allocation3 + $0x160] sm:$0xf]
          %v349 = vld [vmem:[#allocation3 + $0x164] sm:$0xf]
          %v350 = vld [vmem:[#allocation3 + $0x168] sm:$0xf]
          %v351 = vld [vmem:[#allocation3 + $0x16c] sm:$0xf]
          %v352 = vld [vmem:[#allocation3 + $0x170] sm:$0xf]
          %v353 = vld [vmem:[#allocation3 + $0x174] sm:$0xf]
          %v354 = vld [vmem:[#allocation3 + $0x178] sm:$0xf]
          %v355 = vld [vmem:[#allocation3 + $0x17c] sm:$0xf]
          %v356 = vld [vmem:[#allocation3 + $0x180] sm:$0xf]
          %v357 = vld [vmem:[#allocation3 + $0x184] sm:$0xf]
          %v358 = vld [vmem:[#allocation3 + $0x188] sm:$0xf]
          %v359 = vld [vmem:[#allocation3 + $0x18c] sm:$0xf]
          %v360 = vld [vmem:[#allocation3 + $0x190] sm:$0xf]
          %v361 = vld [vmem:[#allocation3 + $0x194] sm:$0xf]
          %v362 = vld [vmem:[#allocation3 + $0x198] sm:$0xf]
          %v363 = vld [vmem:[#allocation3 + $0x19c] sm:$0xf]
          %v364 = vld [vmem:[#allocation3 + $0x1a0] sm:$0xf]
          %v365 = vld [vmem:[#allocation3 + $0x1a4] sm:$0xf]
          %v366 = vld [vmem:[#allocation3 + $0x1a8] sm:$0xf]
          %v367 = vld [vmem:[#allocation3 + $0x1ac] sm:$0xf]
          %v368 = vld [vmem:[#allocation3 + $0x1b0] sm:$0xf]
          %v369 = vld [vmem:[#allocation3 + $0x1b4] sm:$0xf]
          %v370 = vld [vmem:[#allocation3 + $0x1b8] sm:$0xf]
          %v371 = vld [vmem:[#allocation3 + $0x1bc] sm:$0xf]
          %v372 = vld [vmem:[#allocation3 + $0x1c0] sm:$0xf]
          %v373 = vld [vmem:[#allocation3 + $0x1c4] sm:$0xf]
          %v374 = vld [vmem:[#allocation3 + $0x1c8] sm:$0xf]
          %v375 = vld [vmem:[#allocation3 + $0x1cc] sm:$0xf]
          %v376 = vld [vmem:[#allocation3 + $0x1d0] sm:$0xf]
          %v377 = vld [vmem:[#allocation3 + $0x1d4] sm:$0xf]
          %v378 = vld [vmem:[#allocation3 + $0x1d8] sm:$0xf]
          %v379 = vld [vmem:[#allocation3 + $0x1dc] sm:$0xf]
          %v380 = vld [vmem:[#allocation3 + $0x1e0] sm:$0xf]
          %v381 = vld [vmem:[#allocation3 + $0x1e4] sm:$0xf]
          %v382 = vld [vmem:[#allocation3 + $0x1e8] sm:$0xf]
          %v383 = vld [vmem:[#allocation3 + $0x1ec] sm:$0xf]
          %v384 = vld [vmem:[#allocation3 + $0x1f0] sm:$0xf]
          %v385 = vld [vmem:[#allocation3 + $0x1f4] sm:$0xf]
          %v386 = vld [vmem:[#allocation3 + $0x1f8] sm:$0xf]
          %v387 = vld [vmem:[#allocation3 + $0x1fc] sm:$0xf]
          %v516 = vunpack.c.l.b16 %v260
          %v517 = vunpack.c.l.b16 %v261
          %v518 = vunpack.c.l.b16 %v262
          %v519 = vunpack.c.l.b16 %v263
          %v520 = vunpack.c.l.b16 %v264
          %v521 = vunpack.c.l.b16 %v265
          %v522 = vunpack.c.l.b16 %v266
          %v523 = vunpack.c.l.b16 %v267
          %v524 = vunpack.c.l.b16 %v268
          %v525 = vunpack.c.l.b16 %v269
          %v526 = vunpack.c.l.b16 %v270
          %v527 = vunpack.c.l.b16 %v271
          %v528 = vunpack.c.l.b16 %v272
          %v529 = vunpack.c.l.b16 %v273
          %v530 = vunpack.c.l.b16 %v274
          %v531 = vunpack.c.l.b16 %v275
          %v532 = vunpack.c.l.b16 %v276
          %v533 = vunpack.c.l.b16 %v277
          %v534 = vunpack.c.l.b16 %v278
          %v535 = vunpack.c.l.b16 %v279
          %v536 = vunpack.c.l.b16 %v280
          %v537 = vunpack.c.l.b16 %v281
          %v538 = vunpack.c.l.b16 %v282
          %v539 = vunpack.c.l.b16 %v283
          %v540 = vunpack.c.l.b16 %v284
          %v541 = vunpack.c.l.b16 %v285
          %v542 = vunpack.c.l.b16 %v286
          %v543 = vunpack.c.l.b16 %v287
          %v544 = vunpack.c.l.b16 %v288
          %v545 = vunpack.c.l.b16 %v289
          %v546 = vunpack.c.l.b16 %v290
          %v547 = vunpack.c.l.b16 %v291
          %v548 = vunpack.c.l.b16 %v292
          %v549 = vunpack.c.l.b16 %v293
          %v550 = vunpack.c.l.b16 %v294
          %v551 = vunpack.c.l.b16 %v295
          %v552 = vunpack.c.l.b16 %v296
          %v553 = vunpack.c.l.b16 %v297
          %v554 = vunpack.c.l.b16 %v298
          %v555 = vunpack.c.l.b16 %v299
          %v556 = vunpack.c.l.b16 %v300
          %v557 = vunpack.c.l.b16 %v301
          %v558 = vunpack.c.l.b16 %v302
          %v559 = vunpack.c.l.b16 %v303
          %v560 = vunpack.c.l.b16 %v304
          %v561 = vunpack.c.l.b16 %v305
          %v562 = vunpack.c.l.b16 %v306
          %v563 = vunpack.c.l.b16 %v307
          %v564 = vunpack.c.l.b16 %v308
          %v565 = vunpack.c.l.b16 %v309
          %v566 = vunpack.c.l.b16 %v310
          %v567 = vunpack.c.l.b16 %v311
          %v568 = vunpack.c.l.b16 %v312
          %v569 = vunpack.c.l.b16 %v313
          %v570 = vunpack.c.l.b16 %v314
          %v571 = vunpack.c.l.b16 %v315
          %v572 = vunpack.c.l.b16 %v316
          %v573 = vunpack.c.l.b16 %v317
          %v574 = vunpack.c.l.b16 %v318
          %v575 = vunpack.c.l.b16 %v319
          %v576 = vunpack.c.l.b16 %v320
          %v577 = vunpack.c.l.b16 %v321
          %v578 = vunpack.c.l.b16 %v322
          %v579 = vunpack.c.l.b16 %v323
          %v580 = vunpack.c.l.b16 %v324
          %v581 = vunpack.c.l.b16 %v325
          %v582 = vunpack.c.l.b16 %v326
          %v583 = vunpack.c.l.b16 %v327
          %v584 = vunpack.c.l.b16 %v328
          %v585 = vunpack.c.l.b16 %v329
          %v586 = vunpack.c.l.b16 %v330
          %v587 = vunpack.c.l.b16 %v331
          %v588 = vunpack.c.l.b16 %v332
          %v589 = vunpack.c.l.b16 %v333
          %v590 = vunpack.c.l.b16 %v334
          %v591 = vunpack.c.l.b16 %v335
          %v592 = vunpack.c.l.b16 %v336
          %v593 = vunpack.c.l.b16 %v337
          %v594 = vunpack.c.l.b16 %v338
          %v595 = vunpack.c.l.b16 %v339
          %v596 = vunpack.c.l.b16 %v340
          %v597 = vunpack.c.l.b16 %v341
          %v598 = vunpack.c.l.b16 %v342
          %v599 = vunpack.c.l.b16 %v343
          %v600 = vunpack.c.l.b16 %v344
          %v601 = vunpack.c.l.b16 %v345
          %v602 = vunpack.c.l.b16 %v346
          %v603 = vunpack.c.l.b16 %v347
          %v604 = vunpack.c.l.b16 %v348
          %v605 = vunpack.c.l.b16 %v349
          %v606 = vunpack.c.l.b16 %v350
          %v607 = vunpack.c.l.b16 %v351
          %v608 = vunpack.c.l.b16 %v352
          %v609 = vunpack.c.l.b16 %v353
          %v610 = vunpack.c.l.b16 %v354
          %v611 = vunpack.c.l.b16 %v355
          %v612 = vunpack.c.l.b16 %v356
          %v613 = vunpack.c.l.b16 %v357
          %v614 = vunpack.c.l.b16 %v358
          %v615 = vunpack.c.l.b16 %v359
          %v616 = vunpack.c.l.b16 %v360
          %v617 = vunpack.c.l.b16 %v361
          %v618 = vunpack.c.l.b16 %v362
          %v619 = vunpack.c.l.b16 %v363
          %v620 = vunpack.c.l.b16 %v364
          %v621 = vunpack.c.l.b16 %v365
          %v622 = vunpack.c.l.b16 %v366
          %v623 = vunpack.c.l.b16 %v367
          %v624 = vunpack.c.l.b16 %v368
          %v625 = vunpack.c.l.b16 %v369
          %v626 = vunpack.c.l.b16 %v370
          %v627 = vunpack.c.l.b16 %v371
          %v628 = vunpack.c.l.b16 %v372
          %v629 = vunpack.c.l.b16 %v373
          %v630 = vunpack.c.l.b16 %v374
          %v631 = vunpack.c.l.b16 %v375
          %v632 = vunpack.c.l.b16 %v376
          %v633 = vunpack.c.l.b16 %v377
          %v634 = vunpack.c.l.b16 %v378
          %v635 = vunpack.c.l.b16 %v379
          %v636 = vunpack.c.l.b16 %v380
          %v637 = vunpack.c.l.b16 %v381
          %v638 = vunpack.c.l.b16 %v382
          %v639 = vunpack.c.l.b16 %v383
          %v640 = vunpack.c.l.b16 %v384
          %v641 = vunpack.c.l.b16 %v385
          %v642 = vunpack.c.l.b16 %v386
          %v643 = vunpack.c.l.b16 %v387
          %v644 = vpack.c.b16 %v517, %v516
          %v645 = vpack.c.b16 %v519, %v518
          %v646 = vpack.c.b16 %v521, %v520
          %v647 = vpack.c.b16 %v523, %v522
          %v648 = vpack.c.b16 %v525, %v524
          %v649 = vpack.c.b16 %v527, %v526
          %v650 = vpack.c.b16 %v529, %v528
          %v651 = vpack.c.b16 %v531, %v530
          %v652 = vpack.c.b16 %v533, %v532
          %v653 = vpack.c.b16 %v535, %v534
          %v654 = vpack.c.b16 %v537, %v536
          %v655 = vpack.c.b16 %v539, %v538
          %v656 = vpack.c.b16 %v541, %v540
          %v657 = vpack.c.b16 %v543, %v542
          %v658 = vpack.c.b16 %v545, %v544
          %v659 = vpack.c.b16 %v547, %v546
          %v660 = vpack.c.b16 %v549, %v548
          %v661 = vpack.c.b16 %v551, %v550
          %v662 = vpack.c.b16 %v553, %v552
          %v663 = vpack.c.b16 %v555, %v554
          %v664 = vpack.c.b16 %v557, %v556
          %v665 = vpack.c.b16 %v559, %v558
          %v666 = vpack.c.b16 %v561, %v560
          %v667 = vpack.c.b16 %v563, %v562
          %v668 = vpack.c.b16 %v565, %v564
          %v669 = vpack.c.b16 %v567, %v566
          %v670 = vpack.c.b16 %v569, %v568
          %v671 = vpack.c.b16 %v571, %v570
          %v672 = vpack.c.b16 %v573, %v572
          %v673 = vpack.c.b16 %v575, %v574
          %v674 = vpack.c.b16 %v577, %v576
          %v675 = vpack.c.b16 %v579, %v578
          %v676 = vpack.c.b16 %v581, %v580
          %v677 = vpack.c.b16 %v583, %v582
          %v678 = vpack.c.b16 %v585, %v584
          %v679 = vpack.c.b16 %v587, %v586
          %v680 = vpack.c.b16 %v589, %v588
          %v681 = vpack.c.b16 %v591, %v590
          %v682 = vpack.c.b16 %v593, %v592
          %v683 = vpack.c.b16 %v595, %v594
          %v684 = vpack.c.b16 %v597, %v596
          %v685 = vpack.c.b16 %v599, %v598
          %v686 = vpack.c.b16 %v601, %v600
          %v687 = vpack.c.b16 %v603, %v602
          %v688 = vpack.c.b16 %v605, %v604
          %v689 = vpack.c.b16 %v607, %v606
          %v690 = vpack.c.b16 %v609, %v608
          %v691 = vpack.c.b16 %v611, %v610
          %v692 = vpack.c.b16 %v613, %v612
          %v693 = vpack.c.b16 %v615, %v614
          %v694 = vpack.c.b16 %v617, %v616
          %v695 = vpack.c.b16 %v619, %v618
          %v696 = vpack.c.b16 %v621, %v620
          %v697 = vpack.c.b16 %v623, %v622
          %v698 = vpack.c.b16 %v625, %v624
          %v699 = vpack.c.b16 %v627, %v626
          %v700 = vpack.c.b16 %v629, %v628
          %v701 = vpack.c.b16 %v631, %v630
          %v702 = vpack.c.b16 %v633, %v632
          %v703 = vpack.c.b16 %v635, %v634
          %v704 = vpack.c.b16 %v637, %v636
          %v705 = vpack.c.b16 %v639, %v638
          %v706 = vpack.c.b16 %v641, %v640
          %v707 = vpack.c.b16 %v643, %v642
          %772 = vmatprep.subr.bf16.mxu0 0
          %773 = vmatpush1.bf16.msra.mxu0 %v644
          %774 = vmatprep.subr.bf16.mxu0 0
          %775 = vmatpush1.bf16.msra.mxu0 %v645
          %776 = vmatprep.subr.bf16.mxu0 0
          %777 = vmatpush1.bf16.msra.mxu0 %v646
          %778 = vmatprep.subr.bf16.mxu0 0
          %779 = vmatpush1.bf16.msra.mxu0 %v647
          %780 = vmatprep.subr.bf16.mxu0 0
          %781 = vmatpush1.bf16.msra.mxu0 %v648
          %782 = vmatprep.subr.bf16.mxu0 0
          %783 = vmatpush1.bf16.msra.mxu0 %v649
          %784 = vmatprep.subr.bf16.mxu0 0
          %785 = vmatpush1.bf16.msra.mxu0 %v650
          %786 = vmatprep.subr.bf16.mxu0 0
          %787 = vmatpush1.bf16.msra.mxu0 %v651
          %788 = vmatprep.subr.bf16.mxu0 0
          %789 = vmatpush1.bf16.msra.mxu0 %v652
          %790 = vmatprep.subr.bf16.mxu0 0
          %791 = vmatpush1.bf16.msra.mxu0 %v653
          %792 = vmatprep.subr.bf16.mxu0 0
          %793 = vmatpush1.bf16.msra.mxu0 %v654
          %794 = vmatprep.subr.bf16.mxu0 0
          %795 = vmatpush1.bf16.msra.mxu0 %v655
          %796 = vmatprep.subr.bf16.mxu0 0
          %797 = vmatpush1.bf16.msra.mxu0 %v656
          %798 = vmatprep.subr.bf16.mxu0 0
          %799 = vmatpush1.bf16.msra.mxu0 %v657
          %800 = vmatprep.subr.bf16.mxu0 0
          %801 = vmatpush1.bf16.msra.mxu0 %v658
          %802 = vmatprep.subr.bf16.mxu0 0
          %803 = vmatpush1.bf16.msra.mxu0 %v659
          %804 = vmatprep.mubr.bf16.mxu0 %v253
          %805 = vmatmul.mubr.bf16.gmra.mrb[0].mxu0 %v252
          %v806 = vpop.f32.mrb[0].mxu0
          %v807 = vadd.f32 0.0, %v806
          %v808 = vpop.f32.mrb[0].mxu0
          %v809 = vpop.f32.mrb[0].mxu0
          %v810 = vadd.f32 0.0, %v809
          %v811 = vpop.f32.mrb[0].mxu0
          %812 = vdwg.mxu0
          %813 = vmatprep.subr.bf16.mxu0 0
          %814 = vmatpush1.bf16.msra.mxu0 %v660
          %815 = vmatprep.subr.bf16.mxu0 0
          %816 = vmatpush1.bf16.msra.mxu0 %v661
          %817 = vmatprep.subr.bf16.mxu0 0
          %818 = vmatpush1.bf16.msra.mxu0 %v662
          %819 = vmatprep.subr.bf16.mxu0 0
          %820 = vmatpush1.bf16.msra.mxu0 %v663
          %821 = vmatprep.subr.bf16.mxu0 0
          %822 = vmatpush1.bf16.msra.mxu0 %v664
          %823 = vmatprep.subr.bf16.mxu0 0
          %824 = vmatpush1.bf16.msra.mxu0 %v665
          %825 = vmatprep.subr.bf16.mxu0 0
          %826 = vmatpush1.bf16.msra.mxu0 %v666
          %827 = vmatprep.subr.bf16.mxu0 0
          %828 = vmatpush1.bf16.msra.mxu0 %v667
          %829 = vmatprep.subr.bf16.mxu0 0
          %830 = vmatpush1.bf16.msra.mxu0 %v668
          %831 = vmatprep.subr.bf16.mxu0 0
          %832 = vmatpush1.bf16.msra.mxu0 %v669
          %833 = vmatprep.subr.bf16.mxu0 0
          %834 = vmatpush1.bf16.msra.mxu0 %v670
          %835 = vmatprep.subr.bf16.mxu0 0
          %836 = vmatpush1.bf16.msra.mxu0 %v671
          %837 = vmatprep.subr.bf16.mxu0 0
          %838 = vmatpush1.bf16.msra.mxu0 %v672
          %839 = vmatprep.subr.bf16.mxu0 0
          %840 = vmatpush1.bf16.msra.mxu0 %v673
          %841 = vmatprep.subr.bf16.mxu0 0
          %842 = vmatpush1.bf16.msra.mxu0 %v674
          %843 = vmatprep.subr.bf16.mxu0 0
          %844 = vmatpush1.bf16.msra.mxu0 %v675
          %845 = vmatprep.mubr.bf16.mxu0 %v255
          %846 = vmatmul.mubr.bf16.gmra.mrb[0].mxu0 %v254
          %v847 = vpop.f32.mrb[0].mxu0
          %v848 = vadd.f32 %v807, %v847
          %v849 = vpop.f32.mrb[0].mxu0
          %v850 = vpop.f32.mrb[0].mxu0
          %v851 = vadd.f32 %v810, %v850
          %v852 = vpop.f32.mrb[0].mxu0
          %853 = vdwg.mxu0
          %854 = vmatprep.subr.bf16.mxu0 0
          %855 = vmatpush1.bf16.msra.mxu0 %v676
          %856 = vmatprep.subr.bf16.mxu0 0
          %857 = vmatpush1.bf16.msra.mxu0 %v677
          %858 = vmatprep.subr.bf16.mxu0 0
          %859 = vmatpush1.bf16.msra.mxu0 %v678
          %860 = vmatprep.subr.bf16.mxu0 0
          %861 = vmatpush1.bf16.msra.mxu0 %v679
          %862 = vmatprep.subr.bf16.mxu0 0
          %863 = vmatpush1.bf16.msra.mxu0 %v680
          %864 = vmatprep.subr.bf16.mxu0 0
          %865 = vmatpush1.bf16.msra.mxu0 %v681
          %866 = vmatprep.subr.bf16.mxu0 0
          %867 = vmatpush1.bf16.msra.mxu0 %v682
          %868 = vmatprep.subr.bf16.mxu0 0
          %869 = vmatpush1.bf16.msra.mxu0 %v683
          %870 = vmatprep.subr.bf16.mxu0 0
          %871 = vmatpush1.bf16.msra.mxu0 %v684
          %872 = vmatprep.subr.bf16.mxu0 0
          %873 = vmatpush1.bf16.msra.mxu0 %v685
          %874 = vmatprep.subr.bf16.mxu0 0
          %875 = vmatpush1.bf16.msra.mxu0 %v686
          %876 = vmatprep.subr.bf16.mxu0 0
          %877 = vmatpush1.bf16.msra.mxu0 %v687
          %878 = vmatprep.subr.bf16.mxu0 0
          %879 = vmatpush1.bf16.msra.mxu0 %v688
          %880 = vmatprep.subr.bf16.mxu0 0
          %881 = vmatpush1.bf16.msra.mxu0 %v689
          %882 = vmatprep.subr.bf16.mxu0 0
          %883 = vmatpush1.bf16.msra.mxu0 %v690
          %884 = vmatprep.subr.bf16.mxu0 0
          %885 = vmatpush1.bf16.msra.mxu0 %v691
          %886 = vmatprep.mubr.bf16.mxu0 %v257
          %887 = vmatmul.mubr.bf16.gmra.mrb[0].mxu0 %v256
          %v888 = vpop.f32.mrb[0].mxu0
          %v889 = vadd.f32 %v848, %v888
          %v890 = vpop.f32.mrb[0].mxu0
          %v891 = vpop.f32.mrb[0].mxu0
          %v892 = vadd.f32 %v851, %v891
          %v893 = vpop.f32.mrb[0].mxu0
          %894 = vdwg.mxu0
          %895 = vmatprep.subr.bf16.mxu0 0
          %896 = vmatpush1.bf16.msra.mxu0 %v692
          %897 = vmatprep.subr.bf16.mxu0 0
          %898 = vmatpush1.bf16.msra.mxu0 %v693
          %899 = vmatprep.subr.bf16.mxu0 0
          %900 = vmatpush1.bf16.msra.mxu0 %v694
          %901 = vmatprep.subr.bf16.mxu0 0
          %902 = vmatpush1.bf16.msra.mxu0 %v695
          %903 = vmatprep.subr.bf16.mxu0 0
          %904 = vmatpush1.bf16.msra.mxu0 %v696
          %905 = vmatprep.subr.bf16.mxu0 0
          %906 = vmatpush1.bf16.msra.mxu0 %v697
          %907 = vmatprep.subr.bf16.mxu0 0
          %908 = vmatpush1.bf16.msra.mxu0 %v698
          %909 = vmatprep.subr.bf16.mxu0 0
          %910 = vmatpush1.bf16.msra.mxu0 %v699
          %911 = vmatprep.subr.bf16.mxu0 0
          %912 = vmatpush1.bf16.msra.mxu0 %v700
          %913 = vmatprep.subr.bf16.mxu0 0
          %914 = vmatpush1.bf16.msra.mxu0 %v701
          %915 = vmatprep.subr.bf16.mxu0 0
          %916 = vmatpush1.bf16.msra.mxu0 %v702
          %917 = vmatprep.subr.bf16.mxu0 0
          %918 = vmatpush1.bf16.msra.mxu0 %v703
          %919 = vmatprep.subr.bf16.mxu0 0
          %920 = vmatpush1.bf16.msra.mxu0 %v704
          %921 = vmatprep.subr.bf16.mxu0 0
          %922 = vmatpush1.bf16.msra.mxu0 %v705
          %923 = vmatprep.subr.bf16.mxu0 0
          %924 = vmatpush1.bf16.msra.mxu0 %v706
          %925 = vmatprep.subr.bf16.mxu0 0
          %926 = vmatpush1.bf16.msra.mxu0 %v707
          %927 = vmatprep.mubr.bf16.mxu0 %v259
          %928 = vmatmul.mubr.bf16.gmra.mrb[0].mxu0 %v258
          %v929 = vpop.f32.mrb[0].mxu0
          %v930 = vadd.f32 %v889, %v929
          %v931 = vpop.f32.mrb[0].mxu0
          %v932 = vpop.f32.mrb[0].mxu0
          %v933 = vadd.f32 %v892, %v932
          %v934 = vpop.f32.mrb[0].mxu0
          %935 = vdwg.mxu0
          %v936 = vmax.f32 %v930, 0.0
          %v937 = vmax.f32 %v933, 0.0
          %v938 = vpack.c.bf16 %v937, %v936
          %939 = vst [vmem:[#allocation2] sm:$0xff] %v938
        $region44: #{basicnet_forward.1} parent=35 // pred_fallthru
          _
        %p940 = scmp.gt.s32.totalorder %s21, 0
        // Predicated region
        $region45: #{basicnet_forward.1} parent=35 // pred_check
          %p941 = pneg %p940
        $region46: #{basicnet_forward.1} parent=35 // pred_check_branch
          %943 = sbr.rel (%p941) target = $region48
        $region47: #{basicnet_forward.1} parent=35 // pred_region
          %s944 = ssub.s32 %s21, 1
          %p945 = scmp.gt.s32.totalorder %s944, 0
          %s946 = scalar_select %p945, %s944, 0
          %s947 = smul.u32 %s946, 16
          %s948 = smul.addr %s947, 4
          %s949 = scalar_lea.vmem %s2, %s948
          %v950 = vld [vmem:[%s949] sm:$0xf]
          %v951 = vld [vmem:[%s949 + $0x4] sm:$0xf]
          %v952 = vld [vmem:[%s949 + $0x8] sm:$0xf]
          %v953 = vld [vmem:[%s949 + $0xc] sm:$0xf]
          %v954 = vld [vmem:[%s949 + $0x10] sm:$0xf]
          %v955 = vld [vmem:[%s949 + $0x14] sm:$0xf]
          %v956 = vld [vmem:[%s949 + $0x18] sm:$0xf]
          %v957 = vld [vmem:[%s949 + $0x1c] sm:$0xf]
          %v958 = vld [vmem:[%s949 + $0x20] sm:$0xf]
          %v959 = vld [vmem:[%s949 + $0x24] sm:$0xf]
          %v960 = vld [vmem:[%s949 + $0x28] sm:$0xf]
          %v961 = vld [vmem:[%s949 + $0x2c] sm:$0xf]
          %v962 = vld [vmem:[%s949 + $0x30] sm:$0xf]
          %v963 = vld [vmem:[%s949 + $0x34] sm:$0xf]
          %v964 = vld [vmem:[%s949 + $0x38] sm:$0xf]
          %v965 = vld [vmem:[%s949 + $0x3c] sm:$0xf]
          %v966 = vld [vmem:[#allocation2] sm:$0xff]
          %v983 = vunpack.c.l.b16 %v950
          %v984 = vunpack.c.l.b16 %v951
          %v985 = vunpack.c.l.b16 %v952
          %v986 = vunpack.c.l.b16 %v953
          %v987 = vunpack.c.l.b16 %v954
          %v988 = vunpack.c.l.b16 %v955
          %v989 = vunpack.c.l.b16 %v956
          %v990 = vunpack.c.l.b16 %v957
          %v991 = vunpack.c.l.b16 %v958
          %v992 = vunpack.c.l.b16 %v959
          %v993 = vunpack.c.l.b16 %v960
          %v994 = vunpack.c.l.b16 %v961
          %v995 = vunpack.c.l.b16 %v962
          %v996 = vunpack.c.l.b16 %v963
          %v997 = vunpack.c.l.b16 %v964
          %v998 = vunpack.c.l.b16 %v965
          %v999 = vpack.c.b16 %v984, %v983
          %v1000 = vpack.c.b16 %v986, %v985
          %v1001 = vpack.c.b16 %v988, %v987
          %v1002 = vpack.c.b16 %v990, %v989
          %v1003 = vpack.c.b16 %v992, %v991
          %v1004 = vpack.c.b16 %v994, %v993
          %v1005 = vpack.c.b16 %v996, %v995
          %v1006 = vpack.c.b16 %v998, %v997
          %1015 = vmatprep.subr.bf16.mxu0 0
          %1016 = vmatpush1.bf16.msra.mxu0 %v999
          %1017 = vmatprep.subr.bf16.mxu0 0
          %1018 = vmatpush1.bf16.msra.mxu0 %v1000
          %1019 = vmatprep.subr.bf16.mxu0 0
          %1020 = vmatpush1.bf16.msra.mxu0 %v1001
          %1021 = vmatprep.subr.bf16.mxu0 0
          %1022 = vmatpush1.bf16.msra.mxu0 %v1002
          %1023 = vmatprep.subr.bf16.mxu0 0
          %1024 = vmatpush1.bf16.msra.mxu0 %v1003
          %1025 = vmatprep.subr.bf16.mxu0 0
          %1026 = vmatpush1.bf16.msra.mxu0 %v1004
          %1027 = vmatprep.subr.bf16.mxu0 0
          %1028 = vmatpush1.bf16.msra.mxu0 %v1005
          %1029 = vmatprep.subr.bf16.mxu0 0
          %1030 = vmatpush1.bf16.msra.mxu0 %v1006
          %1031 = vmatprep.subr.bf16.mxu0 0
          %1032 = vmatpush1.bf16.msra.mxu0 0
          %1033 = vmatprep.subr.bf16.mxu0 0
          %1034 = vmatpush1.bf16.msra.mxu0 0
          %1035 = vmatprep.subr.bf16.mxu0 0
          %1036 = vmatpush1.bf16.msra.mxu0 0
          %1037 = vmatprep.subr.bf16.mxu0 0
          %1038 = vmatpush1.bf16.msra.mxu0 0
          %1039 = vmatprep.subr.bf16.mxu0 0
          %1040 = vmatpush1.bf16.msra.mxu0 0
          %1041 = vmatprep.subr.bf16.mxu0 0
          %1042 = vmatpush1.bf16.msra.mxu0 0
          %1043 = vmatprep.subr.bf16.mxu0 0
          %1044 = vmatpush1.bf16.msra.mxu0 0
          %1045 = vmatprep.subr.bf16.mxu0 0
          %1046 = vmatpush1.bf16.msra.mxu0 0
          %1047 = vmatprep.mubr.bf16.mxu0 0
          %1048 = vmatmul.mubr.bf16.gmra.mrb[0].mxu0 %v966
          %v1049 = vpop.f32.mrb[0].mxu0
          %v1050 = vadd.f32 0.0, %v1049
          %v1051 = vpop.f32.mrb[0].mxu0
          %v1052 = vpop.f32.mrb[0].mxu0
          %v1053 = vadd.f32 0.0, %v1052
          %v1054 = vpop.f32.mrb[0].mxu0
          %1055 = vdwg.mxu0
          %v1056 = vmax.f32 %v1050, 0.0
          %v1057 = vmax.f32 %v1053, 0.0
          %v1058 = vpack.c.bf16 %v1057, %v1056
          %p1059 = scmp.lt.s32.totalorder %s21, 2
          // Predicated region
          $region49: #{basicnet_forward.1} parent=47 // pred_check
            %p1060 = pneg %p1059
          $region50: #{basicnet_forward.1} parent=47 // pred_check_branch
            %1062 = sbr.rel (%p1060) target = $region52
          $region51: #{basicnet_forward.1} parent=47 // pred_region
            %1063 = vst [vmem:[#allocation2] sm:$0xff] %v1058
          $region52: #{basicnet_forward.1} parent=47 // pred_fallthru
            _
          %p1064 = scmp.eq.s32.totalorder %s21, 2
          // Predicated region
          $region53: #{basicnet_forward.1} parent=47 // pred_check
            %p1065 = pneg %p1064
          $region54: #{basicnet_forward.1} parent=47 // pred_check_branch
            %1067 = sbr.rel (%p1065) target = $region56
          $region55: #{basicnet_forward.1} parent=47 // pred_region
            %v1068 = vld [vmem:[%s3] sm:$0xf]
            %v1069 = vld [vmem:[%s3 + $0x4] sm:$0xf]
            %v1070 = vld [vmem:[%s3 + $0x8] sm:$0xf]
            %v1071 = vld [vmem:[%s3 + $0xc] sm:$0xf]
            %v1072 = vld [vmem:[%s3 + $0x10] sm:$0xf]
            %v1073 = vld [vmem:[%s3 + $0x14] sm:$0xf]
            %v1074 = vld [vmem:[%s3 + $0x18] sm:$0xf]
            %v1075 = vld [vmem:[%s3 + $0x1c] sm:$0xf]
            %v1076 = vld [vmem:[%s3 + $0x20] sm:$0xf]
            %v1077 = vld [vmem:[%s3 + $0x24] sm:$0xf]
            %v1078 = vld [vmem:[%s3 + $0x28] sm:$0xf]
            %v1079 = vld [vmem:[%s3 + $0x2c] sm:$0xf]
            %v1080 = vld [vmem:[%s3 + $0x30] sm:$0xf]
            %v1081 = vld [vmem:[%s3 + $0x34] sm:$0xf]
            %v1082 = vld [vmem:[%s3 + $0x38] sm:$0xf]
            %v1083 = vld [vmem:[%s3 + $0x3c] sm:$0xf]
            %v1100 = vunpack.c.l.b16 %v1068
            %v1101 = vunpack.c.l.b16 %v1069
            %v1102 = vunpack.c.l.b16 %v1070
            %v1103 = vunpack.c.l.b16 %v1071
            %v1104 = vunpack.c.l.b16 %v1072
            %v1105 = vunpack.c.l.b16 %v1073
            %v1106 = vunpack.c.l.b16 %v1074
            %v1107 = vunpack.c.l.b16 %v1075
            %v1108 = vunpack.c.l.b16 %v1076
            %v1109 = vunpack.c.l.b16 %v1077
            %v1110 = vunpack.c.l.b16 %v1078
            %v1111 = vunpack.c.l.b16 %v1079
            %v1112 = vunpack.c.l.b16 %v1080
            %v1113 = vunpack.c.l.b16 %v1081
            %v1114 = vunpack.c.l.b16 %v1082
            %v1115 = vunpack.c.l.b16 %v1083
            %v1116 = vpack.c.b16 %v1101, %v1100
            %v1117 = vpack.c.b16 %v1103, %v1102
            %v1118 = vpack.c.b16 %v1105, %v1104
            %v1119 = vpack.c.b16 %v1107, %v1106
            %v1120 = vpack.c.b16 %v1109, %v1108
            %v1121 = vpack.c.b16 %v1111, %v1110
            %v1122 = vpack.c.b16 %v1113, %v1112
            %v1123 = vpack.c.b16 %v1115, %v1114
            %1132 = vmatprep.subr.bf16.mxu0 0
            %1133 = vmatpush1.bf16.msra.mxu0 %v1116
            %1134 = vmatprep.subr.bf16.mxu0 0
            %1135 = vmatpush1.bf16.msra.mxu0 %v1117
            %1136 = vmatprep.subr.bf16.mxu0 0
            %1137 = vmatpush1.bf16.msra.mxu0 %v1118
            %1138 = vmatprep.subr.bf16.mxu0 0
            %1139 = vmatpush1.bf16.msra.mxu0 %v1119
            %1140 = vmatprep.subr.bf16.mxu0 0
            %1141 = vmatpush1.bf16.msra.mxu0 %v1120
            %1142 = vmatprep.subr.bf16.mxu0 0
            %1143 = vmatpush1.bf16.msra.mxu0 %v1121
            %1144 = vmatprep.subr.bf16.mxu0 0
            %1145 = vmatpush1.bf16.msra.mxu0 %v1122
            %1146 = vmatprep.subr.bf16.mxu0 0
            %1147 = vmatpush1.bf16.msra.mxu0 %v1123
            %1148 = vmatprep.subr.bf16.mxu0 0
            %1149 = vmatpush1.bf16.msra.mxu0 0
            %1150 = vmatprep.subr.bf16.mxu0 0
            %1151 = vmatpush1.bf16.msra.mxu0 0
            %1152 = vmatprep.subr.bf16.mxu0 0
            %1153 = vmatpush1.bf16.msra.mxu0 0
            %1154 = vmatprep.subr.bf16.mxu0 0
            %1155 = vmatpush1.bf16.msra.mxu0 0
            %1156 = vmatprep.subr.bf16.mxu0 0
            %1157 = vmatpush1.bf16.msra.mxu0 0
            %1158 = vmatprep.subr.bf16.mxu0 0
            %1159 = vmatpush1.bf16.msra.mxu0 0
            %1160 = vmatprep.subr.bf16.mxu0 0
            %1161 = vmatpush1.bf16.msra.mxu0 0
            %1162 = vmatprep.subr.bf16.mxu0 0
            %1163 = vmatpush1.bf16.msra.mxu0 0
            %1164 = vmatprep.mubr.bf16.mxu0 0
            %1165 = vmatmul.mubr.bf16.gmra.mrb[0].mxu0 %v1058
            %v1166 = vpop.f32.mrb[0].mxu0
            %v1167 = vadd.f32 0.0, %v1166
            %v1168 = vpop.f32.mrb[0].mxu0
            %v1169 = vpop.f32.mrb[0].mxu0
            %v1170 = vadd.f32 0.0, %v1169
            %v1171 = vpop.f32.mrb[0].mxu0
            %1172 = vdwg.mxu0
            %1173 = vst [vmem:[%s229] sm:$0xff] %v1167
            %1174 = vst [vmem:[%s229 + $0x8] sm:$0xff] %v1170
          $region56: #{basicnet_forward.1} parent=47 // pred_fallthru
            _
        $region48: #{basicnet_forward.1} parent=35 // pred_fallthru
          _
        %s1175 = smul.u32 2, %s20
        %p1176 = scmp.lt.s32.totalorder %s1175, 1
        %s1177 = scalar_select %p1176, %s1175, 1
        %s1178 = smul.addr %s1177, 8
        %s1179 = scalar_lea.vmem %s4, %s1178
        // Predicated region
        $region57: #{basicnet_forward.1} parent=35 // pred_check
          %p1180 = pneg %p135
        $region58: #{basicnet_forward.1} parent=35 // pred_check_branch
          %1182 = sbr.rel (%p1180) target = $region60
        $region59: #{basicnet_forward.1} parent=35 // pred_region
          %s1183 = smul.u32 2, %s20
        $region60: #{basicnet_forward.1} parent=35 // pred_fallthru
          _
        // Predicated region
        $region61: #{basicnet_forward.1} parent=35 // pred_check
          %p1184 = pneg %p135
        $region62: #{basicnet_forward.1} parent=35 // pred_check_branch
          %1186 = sbr.rel (%p1184) target = $region64
        $region63: #{basicnet_forward.1} parent=35 // pred_region
          %s1187 = smul.u32 2, %s20
          %p1188 = scmp.lt.s32.totalorder %s1187, 1
          %s1189 = scalar_select %p1188, %s1187, 1
          %s1190 = smul.addr %s1189, 8
          %s1191 = scalar_lea.vmem %s4, %s1190
        $region64: #{basicnet_forward.1} parent=35 // pred_fallthru
          _
      $region36: #{basicnet_forward.1} parent=5 // pred_fallthru
        _
      %p1192 = scmp.le.s32.totalorder 2, %s11
      // Predicated region
      $region65: #{basicnet_forward.1} parent=5 // pred_check
        %p1193 = pneg %p1192
      $region66: #{basicnet_forward.1} parent=5 // pred_check_branch
        %1195 = sbr.rel (%p1193) target = $region68
      $region67: #{basicnet_forward.1} parent=5 // pred_region
        %s1196 = ssub.s32 %s11, 2
      $region68: #{basicnet_forward.1} parent=5 // pred_fallthru
        _
    $region6: #{basicnet_forward.1} parent=1 // loop_footer
      %s15 = sadd.s32 1, %s11
    $region7: #{basicnet_forward.1} parent=1 // loop_footer_branch
      %10 = sbr.rel target = $region3
    $region8: #{basicnet_forward.1} parent=1 // loop_exit
      _
    %1197 = vsyncpa [#allocation4], 1
    %s1198 = scalar_lea.sflag [#allocation4], 1
    %1199 = vsyncpa %s1198, 1

</llo_original>
